<compile_context>
chip_gen: v6e
topology: v6e:2x2x1
jax: 0.10.0
libtpu: 0.0.40
codegen_flags: <defaults>
</compile_context>

<pallas_src>
import math

import jax
import jax.numpy as jnp
from jax.experimental import pallas as pl
from jax.experimental.pallas import tpu as pltpu


# ----------------------------- kernel -----------------------------------------------------------

def signal_pe_kernel(x_ref, r_ref, q_ref, pe_ref, divr_ref, divq_ref, o_ref):
    # x_ref:    (bb, bs, Ep)  signal block (caller dtype)
    # r_ref:    (bb, bs, 1)   masked r_pos_enc (f32)
    # q_ref:    (bb, bs, 1)   masked q_pos_enc (f32)
    # pe_ref:   (bs, Ep)      static table: lanes 0::4 -> pe_cos-1, 1::4 -> pe_sin-1, else 0
    # divr_ref: (1, Ep)       div_term at lanes 2::4, 0 elsewhere
    # divq_ref: (1, Ep)       div_term at lanes 3::4, 0 elsewhere
    x = x_ref[...].astype(jnp.float32)                              # (bb, bs, Ep)
    arg = r_ref[...] * divr_ref[...] + q_ref[...] * divq_ref[...]   # lane-broadcast, (bb, bs, Ep)
    # cos(arg)=1 at lanes 0::4 / 1::4 is cancelled by the -1 baked into pe_ref.
    o_ref[...] = (x + pe_ref[...] + jnp.cos(arg)).astype(o_ref.dtype)


# ----------------------------- tiling heuristic ---------------------------------------------------

def _divisors(n):
    return [d for d in range(1, n + 1) if n % d == 0]


def _pick_tiling(B, S, Ep, itemsize):
    """Pick (block_b, block_s): ~1 MiB x-blocks, >= 8 grid steps, <= ~12 MiB per-step VMEM."""
    s_cands = [d for d in _divisors(S) if d % 8 == 0] or [S]
    b_cands = _divisors(B)
    min_bs = min(s_cands)
    max_steps = B * (S // min_bs)
    target_steps = min(8, max_steps)
    vmem_cap = 12 << 20

    best = None
    for bs in s_cands:
        for bb in b_cands:
            steps = (B // bb) * (S // bs)
            x_bytes = bb * bs * Ep * itemsize
            # per-step VMEM estimate:
            #  x + out blocks (caller dtype, double-buffered)
            #  r + q blocks lane-padded to 128 lanes, f32, double-buffered
            #  static pe block (f32, double-buffered; its index changes with the s axis)
            vmem = (2 * 2 * x_bytes
                    + 2 * 2 * bb * bs * 128 * 4
                    + 2 * bs * Ep * 4)
            if vmem > vmem_cap:
                continue
            key = (0 if steps >= target_steps else target_steps - steps,
                   abs(x_bytes - (1 << 20)),
                   -steps)
            if best is None or key < best[0]:
                best = (key, bb, bs)
    if best is None:
        return 1, min_bs
    return best[1], best[2]


# ----------------------------- wrapper -----------------------------------------------------------

def make_pe_tables(d_model, max_len=256):
    """Equivalent of the registered buffers built in SignalPositionalEncoding.__init__."""
    position = jnp.arange(0, max_len, dtype=jnp.float32)[:, None]                    # (L, 1)
    div_term = jnp.exp(jnp.arange(0, d_model, 4, dtype=jnp.float32)
                       * (-math.log(10000.0) / d_model))                             # (E//4,)
    pe_cos = jnp.sin(position * div_term)                                            # (L, E//4)
    pe_sin = jnp.cos(position * div_term)                                            # (L, E//4)
    return div_term, pe_cos, pe_sin


def signal_positional_encoding(x, r_pos_enc, q_pos_enc, signal_mask,
                               div_term, pe_cos, pe_sin):
    B, S, E = x.shape
    assert E % 4 == 0, "d_model must be divisible by 4"
    f32 = jnp.float32

    # ---- pad the lane dim to a multiple of 128 (lane-dense loads/stores) ----
    Ep = ((E + 127) // 128) * 128
    x_in = x if Ep == E else jnp.pad(x, ((0, 0), (0, 0), (0, Ep - E)))

    # ---- static additive table with the cos(0)=1 correction folded in ----
    static_pe = jnp.zeros((S, E), f32)
    static_pe = static_pe.at[:, 0::4].set(pe_cos[:S].astype(f32) - 1.0)
    static_pe = static_pe.at[:, 1::4].set(pe_sin[:S].astype(f32) - 1.0)
    div_r = jnp.zeros((1, E), f32).at[0, 2::4].set(div_term.astype(f32))
    div_q = jnp.zeros((1, E), f32).at[0, 3::4].set(div_term.astype(f32))
    if Ep != E:
        static_pe = jnp.pad(static_pe, ((0, 0), (0, Ep - E)))
        div_r = jnp.pad(div_r, ((0, 0), (0, Ep - E)))
        div_q = jnp.pad(div_q, ((0, 0), (0, Ep - E)))

    # ---- fold the padding mask into r/q on the tiny (B, S) arrays (skip when no mask) ----
    rk = r_pos_enc.astype(f32)
    qk = q_pos_enc.astype(f32)
    if signal_mask is not None:
        keep = 1.0 - signal_mask.astype(f32)        # True = padded -> keep = 0
        rk = rk * keep
        qk = qk * keep
    r3 = rk[..., None]                               # (B, S, 1)
    q3 = qk[..., None]

    block_b, block_s = _pick_tiling(B, S, Ep, jnp.dtype(x.dtype).itemsize)
    grid = (B // block_b, S // block_s)

    out = pl.pallas_call(
        signal_pe_kernel,
        out_shape=jax.ShapeDtypeStruct((B, S, Ep), x_in.dtype),
        grid=grid,
        in_specs=[
            pl.BlockSpec((block_b, block_s, Ep), lambda b, s: (b, s, 0)),   # x
            pl.BlockSpec((block_b, block_s, 1), lambda b, s: (b, s, 0)),    # r_pos_enc (masked)
            pl.BlockSpec((block_b, block_s, 1), lambda b, s: (b, s, 0)),    # q_pos_enc (masked)
            pl.BlockSpec((block_s, Ep), lambda b, s: (s, 0)),               # static_pe'
            pl.BlockSpec((1, Ep), lambda b, s: (0, 0)),                     # div_r
            pl.BlockSpec((1, Ep), lambda b, s: (0, 0)),                     # div_q
        ],
        out_specs=pl.BlockSpec((block_b, block_s, Ep), lambda b, s: (b, s, 0)),
        input_output_aliases={0: 0},                 # op is semantically x += PE
        compiler_params=pltpu.CompilerParams(
            dimension_semantics=("parallel", "parallel"),
            vmem_limit_bytes=32 << 20,
        ),
    )(x_in, r3, q3, static_pe, div_r, div_q)

    if Ep != E:
        out = out[..., :E]
    return out


# ----------------------------- pure-JAX reference ------------------------------------------------

def reference(x, r_pos_enc, q_pos_enc, signal_mask, div_term, pe_cos, pe_sin):
    B, S, E = x.shape
    if signal_mask is not None:
        keep = (~signal_mask).astype(jnp.float32)
        r_pos_enc = r_pos_enc * keep
        q_pos_enc = q_pos_enc * keep
    out = x.astype(jnp.float32)
    out = out.at[:, :, 0::4].add(pe_cos[:S])
    out = out.at[:, :, 1::4].add(pe_sin[:S])
    out = out.at[:, :, 2::4].add(jnp.cos(r_pos_enc[..., None] * div_term))
    out = out.at[:, :, 3::4].add(jnp.cos(q_pos_enc[..., None] * div_term))
    return out


# ----------------------------- demo ---------------------------------------------------------------

if __name__ == "__main__":
    B, S, E, MAX_LEN = 4, 16, 128, 256

    key = jax.random.PRNGKey(0)
    k_x, k_r, k_q = jax.random.split(key, 3)
    x = jax.random.normal(k_x, (B, S, E), jnp.float32)
    r_pos = jax.random.uniform(k_r, (B, S), jnp.float32, 0.0, 10.0)
    q_pos = jax.random.uniform(k_q, (B, S), jnp.float32, 0.0, 10.0)
    # key_padding style mask: True = padded. Per-batch valid lengths S, S-3, S-5, 2.
    lengths = jnp.array([S, S - 3, S - 5, 2])
    signal_mask = jnp.arange(S)[None, :] >= lengths[:, None]

    div_term, pe_cos, pe_sin = make_pe_tables(E, MAX_LEN)

    # f32 with mask
    out = jax.block_until_ready(
        signal_positional_encoding(x, r_pos, q_pos, signal_mask, div_term, pe_cos, pe_sin))
    ref = reference(x, r_pos, q_pos, signal_mask, div_term, pe_cos, pe_sin)
    assert out.shape == (B, S, E)
    assert jnp.allclose(out, ref, atol=1e-5, rtol=1e-5), float(jnp.max(jnp.abs(out - ref)))

    # f32, no mask (keep-multiplies skipped entirely in the wrapper)
    out_nm = jax.block_until_ready(
        signal_positional_encoding(x, r_pos, q_pos, None, div_term, pe_cos, pe_sin))
    ref_nm = reference(x, r_pos, q_pos, None, div_term, pe_cos, pe_sin)
    assert jnp.allclose(out_nm, ref_nm, atol=1e-5, rtol=1e-5)

    # bf16 I/O (halves HBM traffic; math stays f32 in-kernel)
    x_bf = x.astype(jnp.bfloat16)
    out_bf = jax.block_until_ready(
        signal_positional_encoding(x_bf, r_pos, q_pos, signal_mask, div_term, pe_cos, pe_sin))
    assert out_bf.dtype == jnp.bfloat16
    ref_bf = reference(x_bf.astype(jnp.float32), r_pos, q_pos, signal_mask,
                       div_term, pe_cos, pe_sin)
    assert jnp.allclose(out_bf.astype(jnp.float32), ref_bf, atol=5e-2, rtol=5e-2)

    # non-multiple-of-128 d_model path (lane padding in the wrapper, sliced after the call)
    E2 = 20
    div2, pec2, pes2 = make_pe_tables(E2, MAX_LEN)
    x2 = jax.random.normal(k_x, (B, S, E2), jnp.float32)
    out2 = jax.block_until_ready(
        signal_positional_encoding(x2, r_pos, q_pos, signal_mask, div2, pec2, pes2))
    ref2 = reference(x2, r_pos, q_pos, signal_mask, div2, pec2, pes2)
    assert out2.shape == (B, S, E2)
    assert jnp.allclose(out2, ref2, atol=1e-5, rtol=1e-5)

    print("KERNEL_OK")
</pallas_src>

<mosaic_0001>
module attributes {stable_mosaic.version = 11 : i64} {
  func.func @signal_pe_kernel(%arg0: i32, %arg1: i32, %arg2: memref<1x8x128xf32, #tpu.memory_space<vmem>>, %arg3: memref<1x8x1xf32, #tpu.memory_space<vmem>>, %arg4: memref<1x8x1xf32, #tpu.memory_space<vmem>>, %arg5: memref<8x128xf32, #tpu.memory_space<vmem>>, %arg6: memref<1x128xf32, #tpu.memory_space<vmem>>, %arg7: memref<1x128xf32, #tpu.memory_space<vmem>>, %arg8: memref<1x8x128xf32, #tpu.memory_space<vmem>>) attributes {dimension_semantics = [#tpu.dimension_semantics<parallel>, #tpu.dimension_semantics<parallel>], iteration_bounds = array<i64: 4, 2>, scalar_prefetch = 0 : i64, scratch_operands = 0 : i64, tpu.core_type = #tpu.core_type<tc>, window_params = [{transform_indices = @transform_0, window_bounds = array<i64: 1, 8, 128>}, {transform_indices = @transform_1, window_bounds = array<i64: 1, 8, 1>}, {transform_indices = @transform_2, window_bounds = array<i64: 1, 8, 1>}, {transform_indices = @transform_3, window_bounds = array<i64: 8, 128>}, {pipeline_mode = #tpu.pipeline_mode<synchronous>, transform_indices = @transform_4, window_bounds = array<i64: 1, 128>}, {pipeline_mode = #tpu.pipeline_mode<synchronous>, transform_indices = @transform_5, window_bounds = array<i64: 1, 128>}, {transform_indices = @transform_6, window_bounds = array<i64: 1, 8, 128>}]} {
    %c0 = arith.constant 0 : index
    %c0_0 = arith.constant 0 : index
    %c0_1 = arith.constant 0 : index
    %0 = vector.load %arg2[%c0, %c0_0, %c0_1] : memref<1x8x128xf32, #tpu.memory_space<vmem>>, vector<1x8x128xf32>
    %c0_2 = arith.constant 0 : index
    %c0_3 = arith.constant 0 : index
    %c0_4 = arith.constant 0 : index
    %1 = vector.load %arg3[%c0_2, %c0_3, %c0_4] : memref<1x8x1xf32, #tpu.memory_space<vmem>>, vector<1x8x1xf32>
    %c0_5 = arith.constant 0 : index
    %c0_6 = arith.constant 0 : index
    %2 = vector.load %arg6[%c0_5, %c0_6] : memref<1x128xf32, #tpu.memory_space<vmem>>, vector<1x128xf32>
    %3 = vector.shape_cast %2 : vector<1x128xf32> to vector<1x1x128xf32>
    %4 = vector.broadcast %1 : vector<1x8x1xf32> to vector<1x8x128xf32>
    %5 = vector.broadcast %3 : vector<1x1x128xf32> to vector<1x8x128xf32>
    %6 = arith.mulf %4, %5 : vector<1x8x128xf32>
    %c0_7 = arith.constant 0 : index
    %c0_8 = arith.constant 0 : index
    %c0_9 = arith.constant 0 : index
    %7 = vector.load %arg4[%c0_7, %c0_8, %c0_9] : memref<1x8x1xf32, #tpu.memory_space<vmem>>, vector<1x8x1xf32>
    %c0_10 = arith.constant 0 : index
    %c0_11 = arith.constant 0 : index
    %8 = vector.load %arg7[%c0_10, %c0_11] : memref<1x128xf32, #tpu.memory_space<vmem>>, vector<1x128xf32>
    %9 = vector.shape_cast %8 : vector<1x128xf32> to vector<1x1x128xf32>
    %10 = vector.broadcast %7 : vector<1x8x1xf32> to vector<1x8x128xf32>
    %11 = vector.broadcast %9 : vector<1x1x128xf32> to vector<1x8x128xf32>
    %12 = arith.mulf %10, %11 : vector<1x8x128xf32>
    %13 = arith.addf %6, %12 : vector<1x8x128xf32>
    %c0_12 = arith.constant 0 : index
    %c0_13 = arith.constant 0 : index
    %14 = vector.load %arg5[%c0_12, %c0_13] : memref<8x128xf32, #tpu.memory_space<vmem>>, vector<8x128xf32>
    %15 = vector.shape_cast %14 : vector<8x128xf32> to vector<1x8x128xf32>
    %16 = arith.addf %0, %15 : vector<1x8x128xf32>
    %17 = math.cos %13 : vector<1x8x128xf32>
    %18 = arith.addf %16, %17 : vector<1x8x128xf32>
    %c0_14 = arith.constant 0 : index
    %c0_15 = arith.constant 0 : index
    %c0_16 = arith.constant 0 : index
    %19 = vector.load %arg8[%c0_14, %c0_15, %c0_16] : memref<1x8x128xf32, #tpu.memory_space<vmem>>, vector<1x8x128xf32>
    tpu.vector_store %arg8[%c0_14, %c0_15, %c0_16], %18 {strides = array<i32>} : memref<1x8x128xf32, #tpu.memory_space<vmem>>, vector<1x8x128xf32>,
    return
  }
  func.func @transform_0(%arg0: i32, %arg1: i32) -> (i32, i32, i32) {
    %c0_i32 = arith.constant 0 : i32
    %c0_i32_0 = arith.constant 0 : i32
    return %arg0, %arg1, %c0_i32 : i32, i32, i32
  }
  func.func @transform_1(%arg0: i32, %arg1: i32) -> (i32, i32, i32) {
    %c0_i32 = arith.constant 0 : i32
    %c0_i32_0 = arith.constant 0 : i32
    return %arg0, %arg1, %c0_i32 : i32, i32, i32
  }
  func.func @transform_2(%arg0: i32, %arg1: i32) -> (i32, i32, i32) {
    %c0_i32 = arith.constant 0 : i32
    %c0_i32_0 = arith.constant 0 : i32
    return %arg0, %arg1, %c0_i32 : i32, i32, i32
  }
  func.func @transform_3(%arg0: i32, %arg1: i32) -> (i32, i32) {
    %c0_i32 = arith.constant 0 : i32
    %c0_i32_0 = arith.constant 0 : i32
    return %arg1, %c0_i32 : i32, i32
  }
  func.func @transform_4(%arg0: i32, %arg1: i32) -> (i32, i32) {
    %c0_i32 = arith.constant 0 : i32
    %c0_i32_0 = arith.constant 0 : i32
    %c0_i32_1 = arith.constant 0 : i32
    return %c0_i32, %c0_i32_0 : i32, i32
  }
  func.func @transform_5(%arg0: i32, %arg1: i32) -> (i32, i32) {
    %c0_i32 = arith.constant 0 : i32
    %c0_i32_0 = arith.constant 0 : i32
    %c0_i32_1 = arith.constant 0 : i32
    return %c0_i32, %c0_i32_0 : i32, i32
  }
  func.func @transform_6(%arg0: i32, %arg1: i32) -> (i32, i32, i32) {
    %c0_i32 = arith.constant 0 : i32
    %c0_i32_0 = arith.constant 0 : i32
    return %arg0, %arg1, %c0_i32 : i32, i32, i32
  }
}

</mosaic_0001>

<llo_original>
// kernel: tpu_custom_call.1
$region0: #{tpu_custom_call.1}
  #allocation0 [shape = 'u32[]', space=smem, size = 0x4, offset = 0x4, fixed_abs, tag = 'smem constant byte address 0x4 - core index']
  #allocation1 [shape = 'u32[144,128]{1,0:T(1,128)}', space=vmem, size = 0x12000, scoped, tag = 'internal scratch']
  %s0 = inlined_call_operand.hbm [shape: f32[4,16,128], index: 0, kind: input, shape index: {}, may-alias: {0,6}]
  %s1 = inlined_call_operand.vmem [shape: f32[4,16,1], index: 1, kind: input, shape index: {}]
  %s2 = inlined_call_operand.vmem [shape: f32[4,16,1], index: 2, kind: input, shape index: {}]
  %s3 = inlined_call_operand.vmem [shape: f32[16,128], index: 3, kind: input, shape index: {}]
  %s4 = inlined_call_operand.vmem [shape: f32[1,128], index: 4, kind: input, shape index: {}]
  %s5 = inlined_call_operand.vmem [shape: f32[1,128], index: 5, kind: input, shape index: {}]
  %s6 = inlined_call_operand.hbm [shape: f32[4,16,128], index: 6, kind: output, shape index: {}, may-alias: {0,6}]
  %s7 = sld [smem:[#allocation0]]
  $region61: #{tpu_custom_call.1} parent=0
    _
  %s9 = ssub.s32 1, %s7
  %s10 = scalar_select 0, %s9, %s7
  $region1: #{tpu_custom_call.1} parent=0
    #allocation2 [shape = 'u8[8192]{0}', space=vmem, size = 0x2000, scoped, tag = 'input window, operand 0']
    #allocation3 [shape = 's32[2]{0}', space=sflag, size = 0x8, scoped, tag = 'scoped memory for tpu_custom_call.1']
    #allocation4 [shape = 's32[2]{0}', space=sflag, size = 0x8, scoped, tag = 'scoped memory for tpu_custom_call.1']
    #allocation5 [shape = 'u8[8192]{0}', space=vmem, size = 0x2000, scoped, tag = 'output window, operand 0']
    %11 = vsyncpa [#allocation3], 0
    %s12 = scalar_lea.sflag [#allocation3], 1
    %13 = vsyncpa %s12, 0
    %14 = vsyncpa [#allocation4], 0
    %s15 = scalar_lea.sflag [#allocation4], 1
    %16 = vsyncpa %s15, 0
    loop: start=0, step=1, limit=10
    $region2: #{tpu_custom_call.1} parent=1 // loop_pre_header
      _
    $region3: #{tpu_custom_call.1} parent=1 // loop_header
      %s18 = sphi 0, %s22
      %p19 = scmp.ge.s32.totalorder %s18, 10
      %s25 = sphi 0, %s37
      %s26 = sphi 0, %s33
      %s27 = sphi 0, %s25
      %s28 = sphi 0, %s26
      %s29 = sphi 0, %s27
      %s30 = sphi 0, %s28
      %s42 = sphi 0, %s44
      %s45 = sphi 0, %s42
      %s46 = sphi 0, %s45
      %s62 = sphi 0, %s46
      %s70 = sphi 0, %s72
      %s73 = sphi 0, %s70
      %s74 = sphi 0, %s73
      %s90 = sphi 0, %s74
      %s98 = sphi 0, %s100
      %s101 = sphi 0, %s98
      %s102 = sphi 0, %s101
      %s118 = sphi 0, %s102
      %s124 = sphi 0, %s126
      %s127 = sphi 0, %s124
      %s128 = sphi 0, %s127
      %s144 = sphi 0, %s128
      %s148 = sphi 0, %s148
      %s150 = sphi 0, %s148
      %s151 = sphi 0, %s150
      %s165 = sphi 0, %s151
      %s169 = sphi 0, %s169
      %s171 = sphi 0, %s169
      %s172 = sphi 0, %s171
      %s186 = sphi 0, %s172
      %s194 = sphi 0, %s196
      %s197 = sphi 0, %s194
      %s198 = sphi 0, %s197
      %s214 = sphi 0, %s198
    $region4: #{tpu_custom_call.1} parent=1 // loop_header_branch
      %21 = sbr.rel (%p19) target = $region8
    $region5: #{tpu_custom_call.1} parent=1 // loop_body
      %s23 = ssub.s32 %s18, 1
      %s24 = ssub.s32 %s18, 2
      %s31 = sadd.s32 1, %s26
      %p32 = scmp.ge.s32.totalorder %s31, 2
      %s33 = scalar_select %p32, 0, %s31
      %s34 = sadd.s32 1, %s25
      %s35 = scalar_select %p32, %s34, %s25
      %p36 = scmp.ge.s32.totalorder %s35, 4
      %s37 = scalar_select %p36, 0, %s35
      %s38 = ssub.s32 %s25, %s37
      %s39 = ssub.s32 %s26, %s33
      %s40 = sor.u32 %s38, %s39
      %p41 = scmp.eq.s32.totalorder %s40, 0
      %s43 = sadd.s32 %s42, 1
      %s44 = scalar_select %p41, %s42, %s43
      %p47 = pneg %p41
      %p48 = scmp.eq.s32.totalorder %s18, 7
      %p49 = por %p47, %p48
      %p50 = scmp.ne.s32.totalorder %s42, %s45
      %p51 = scmp.eq.s32.totalorder %s18, 0
      %p52 = por %p50, %p51
      %p53 = scmp.ne.s32.totalorder %s42, %s45
      %p54 = scmp.eq.s32.totalorder %s23, 7
      %p55 = por %p53, %p54
      %p56 = scmp.ne.s32.totalorder %s45, %s46
      %p57 = scmp.eq.s32.totalorder %s23, 0
      %p58 = por %p56, %p57
      %p59 = scmp.ne.s32.totalorder %s45, %s46
      %p60 = scmp.eq.s32.totalorder %s24, 7
      %p61 = por %p59, %p60
      %p63 = scmp.ne.s32.totalorder %s46, %s62
      %p64 = scmp.eq.s32.totalorder %s24, 0
      %p65 = por %p63, %p64
      %s66 = ssub.s32 %s25, %s37
      %s67 = ssub.s32 %s26, %s33
      %s68 = sor.u32 %s66, %s67
      %p69 = scmp.eq.s32.totalorder %s68, 0
      %s71 = sadd.s32 %s70, 1
      %s72 = scalar_select %p69, %s70, %s71
      %p75 = pneg %p69
      %p76 = scmp.eq.s32.totalorder %s18, 7
      %p77 = por %p75, %p76
      %p78 = scmp.ne.s32.totalorder %s70, %s73
      %p79 = scmp.eq.s32.totalorder %s18, 0
      %p80 = por %p78, %p79
      %p81 = scmp.ne.s32.totalorder %s70, %s73
      %p82 = scmp.eq.s32.totalorder %s23, 7
      %p83 = por %p81, %p82
      %p84 = scmp.ne.s32.totalorder %s73, %s74
      %p85 = scmp.eq.s32.totalorder %s23, 0
      %p86 = por %p84, %p85
      %p87 = scmp.ne.s32.totalorder %s73, %s74
      %p88 = scmp.eq.s32.totalorder %s24, 7
      %p89 = por %p87, %p88
      %p91 = scmp.ne.s32.totalorder %s74, %s90
      %p92 = scmp.eq.s32.totalorder %s24, 0
      %p93 = por %p91, %p92
      %s94 = ssub.s32 %s25, %s37
      %s95 = ssub.s32 %s26, %s33
      %s96 = sor.u32 %s94, %s95
      %p97 = scmp.eq.s32.totalorder %s96, 0
      %s99 = sadd.s32 %s98, 1
      %s100 = scalar_select %p97, %s98, %s99
      %p103 = pneg %p97
      %p104 = scmp.eq.s32.totalorder %s18, 7
      %p105 = por %p103, %p104
      %p106 = scmp.ne.s32.totalorder %s98, %s101
      %p107 = scmp.eq.s32.totalorder %s18, 0
      %p108 = por %p106, %p107
      %p109 = scmp.ne.s32.totalorder %s98, %s101
      %p110 = scmp.eq.s32.totalorder %s23, 7
      %p111 = por %p109, %p110
      %p112 = scmp.ne.s32.totalorder %s101, %s102
      %p113 = scmp.eq.s32.totalorder %s23, 0
      %p114 = por %p112, %p113
      %p115 = scmp.ne.s32.totalorder %s101, %s102
      %p116 = scmp.eq.s32.totalorder %s24, 7
      %p117 = por %p115, %p116
      %p119 = scmp.ne.s32.totalorder %s102, %s118
      %p120 = scmp.eq.s32.totalorder %s24, 0
      %p121 = por %p119, %p120
      %s122 = ssub.s32 %s26, %s33
      %p123 = scmp.eq.s32.totalorder %s122, 0
      %s125 = sadd.s32 %s124, 1
      %s126 = scalar_select %p123, %s124, %s125
      %p129 = pneg %p123
      %p130 = scmp.eq.s32.totalorder %s18, 7
      %p131 = por %p129, %p130
      %p132 = scmp.ne.s32.totalorder %s124, %s127
      %p133 = scmp.eq.s32.totalorder %s18, 0
      %p134 = por %p132, %p133
      %p135 = scmp.ne.s32.totalorder %s124, %s127
      %p136 = scmp.eq.s32.totalorder %s23, 7
      %p137 = por %p135, %p136
      %p138 = scmp.ne.s32.totalorder %s127, %s128
      %p139 = scmp.eq.s32.totalorder %s23, 0
      %p140 = por %p138, %p139
      %p141 = scmp.ne.s32.totalorder %s127, %s128
      %p142 = scmp.eq.s32.totalorder %s24, 7
      %p143 = por %p141, %p142
      %p145 = scmp.ne.s32.totalorder %s128, %s144
      %p146 = scmp.eq.s32.totalorder %s24, 0
      %p147 = por %p145, %p146
      %s149 = sadd.s32 %s148, 1
      %p152 = scmp.eq.s32.totalorder %s18, 7
      %p153 = scmp.ne.s32.totalorder %s148, %s150
      %p154 = scmp.eq.s32.totalorder %s18, 0
      %p155 = por %p153, %p154
      %p156 = scmp.ne.s32.totalorder %s148, %s150
      %p157 = scmp.eq.s32.totalorder %s23, 7
      %p158 = por %p156, %p157
      %p159 = scmp.ne.s32.totalorder %s150, %s151
      %p160 = scmp.eq.s32.totalorder %s23, 0
      %p161 = por %p159, %p160
      %p162 = scmp.ne.s32.totalorder %s150, %s151
      %p163 = scmp.eq.s32.totalorder %s24, 7
      %p164 = por %p162, %p163
      %p166 = scmp.ne.s32.totalorder %s151, %s165
      %p167 = scmp.eq.s32.totalorder %s24, 0
      %p168 = por %p166, %p167
      %s170 = sadd.s32 %s169, 1
      %p173 = scmp.eq.s32.totalorder %s18, 7
      %p174 = scmp.ne.s32.totalorder %s169, %s171
      %p175 = scmp.eq.s32.totalorder %s18, 0
      %p176 = por %p174, %p175
      %p177 = scmp.ne.s32.totalorder %s169, %s171
      %p178 = scmp.eq.s32.totalorder %s23, 7
      %p179 = por %p177, %p178
      %p180 = scmp.ne.s32.totalorder %s171, %s172
      %p181 = scmp.eq.s32.totalorder %s23, 0
      %p182 = por %p180, %p181
      %p183 = scmp.ne.s32.totalorder %s171, %s172
      %p184 = scmp.eq.s32.totalorder %s24, 7
      %p185 = por %p183, %p184
      %p187 = scmp.ne.s32.totalorder %s172, %s186
      %p188 = scmp.eq.s32.totalorder %s24, 0
      %p189 = por %p187, %p188
      %s190 = ssub.s32 %s25, %s37
      %s191 = ssub.s32 %s26, %s33
      %s192 = sor.u32 %s190, %s191
      %p193 = scmp.eq.s32.totalorder %s192, 0
      %s195 = sadd.s32 %s194, 1
      %s196 = scalar_select %p193, %s194, %s195
      %p199 = pneg %p193
      %p200 = scmp.eq.s32.totalorder %s18, 7
      %p201 = por %p199, %p200
      %p202 = scmp.ne.s32.totalorder %s194, %s197
      %p203 = scmp.eq.s32.totalorder %s18, 0
      %p204 = por %p202, %p203
      %p205 = scmp.ne.s32.totalorder %s194, %s197
      %p206 = scmp.eq.s32.totalorder %s23, 7
      %p207 = por %p205, %p206
      %p208 = scmp.ne.s32.totalorder %s197, %s198
      %p209 = scmp.eq.s32.totalorder %s23, 0
      %p210 = por %p208, %p209
      %p211 = scmp.ne.s32.totalorder %s197, %s198
      %p212 = scmp.eq.s32.totalorder %s24, 7
      %p213 = por %p211, %p212
      %p215 = scmp.ne.s32.totalorder %s198, %s214
      %p216 = scmp.eq.s32.totalorder %s24, 0
      %p217 = por %p215, %p216
      %p218 = scmp.le.s32.totalorder 1, %s18
      %p219 = scmp.lt.s32.totalorder %s18, 9
      %p220 = pnand %p218, %p219
      %p221 = pneg %p220
      // Predicated region
      $region9: #{tpu_custom_call.1} parent=5 // pred_check
        _
      $region10: #{tpu_custom_call.1} parent=5 // pred_check_branch
        %223 = sbr.rel (%p220) target = $region12
      $region11: #{tpu_custom_call.1} parent=5 // pred_region
        %s224 = ssub.s32 %s18, 1
        // Predicated region
        $region13: #{tpu_custom_call.1} parent=11 // pred_check
          %p225 = pneg %p161
        $region14: #{tpu_custom_call.1} parent=11 // pred_check_branch
          %227 = sbr.rel (%p225) target = $region16
        $region15: #{tpu_custom_call.1} parent=11 // pred_region
          _
        $region16: #{tpu_custom_call.1} parent=11 // pred_fallthru
          _
        // Predicated region
        $region17: #{tpu_custom_call.1} parent=11 // pred_check
          %p228 = pneg %p182
        $region18: #{tpu_custom_call.1} parent=11 // pred_check_branch
          %230 = sbr.rel (%p228) target = $region20
        $region19: #{tpu_custom_call.1} parent=11 // pred_region
          _
        $region20: #{tpu_custom_call.1} parent=11 // pred_fallthru
          _
      $region12: #{tpu_custom_call.1} parent=5 // pred_fallthru
        _
      %p231 = scmp.lt.s32.totalorder %s18, 8
      // Predicated region
      $region21: #{tpu_custom_call.1} parent=5 // pred_check
        %p232 = pneg %p231
      $region22: #{tpu_custom_call.1} parent=5 // pred_check_branch
        %234 = sbr.rel (%p232) target = $region24
      $region23: #{tpu_custom_call.1} parent=5 // pred_region
        // Predicated region
        $region25: #{tpu_custom_call.1} parent=23 // pred_check
          %p235 = pneg %p52
        $region26: #{tpu_custom_call.1} parent=23 // pred_check_branch
          %237 = sbr.rel (%p235) target = $region28
        $region27: #{tpu_custom_call.1} parent=23 // pred_region
          %s238 = sand.u32 %s42, 1
          %s239 = scalar_lea.sflag [#allocation3], %s238
          %s240 = sand.u32 %s42, 1
          %s241 = smul.addr %s240, 8
          %s242 = scalar_lea.vmem [#allocation2], %s241
          %s244 = ssub.s32 128, 128
          %245 = vsyncadd %s239, %s244
          %s246 = smul.addr %s25, 2
          %s247 = sadd.s32 %s26, %s246
          %s248 = smul.addr %s247, 128
          %s249 = scalar_lea.hbm %s0, %s248
          %s251 = sshll.u32 %s242, 4
          %s252 = int_to_ptr.vmem [resolvable:$true] %s251
          %254 = dma.hbm_to_vmem [thread:$0]  %s249, 128, %s252, %s239
        $region28: #{tpu_custom_call.1} parent=23 // pred_fallthru
          _
        // Predicated region
        $region29: #{tpu_custom_call.1} parent=23 // pred_check
          %p255 = pneg %p80
        $region30: #{tpu_custom_call.1} parent=23 // pred_check_branch
          %257 = sbr.rel (%p255) target = $region32
        $region31: #{tpu_custom_call.1} parent=23 // pred_region
          %p258 = scmp.lt.s32.totalorder %s25, 3
          %s259 = scalar_select %p258, %s25, 3
          %p260 = scmp.lt.s32.totalorder %s26, 1
          %s261 = scalar_select %p260, %s26, 1
          %s262 = smul.addr %s259, 2
          %s263 = sadd.s32 %s261, %s262
          %s264 = smul.addr %s263, 8
          %s265 = scalar_lea.vmem %s1, %s264
        $region32: #{tpu_custom_call.1} parent=23 // pred_fallthru
          _
        // Predicated region
        $region33: #{tpu_custom_call.1} parent=23 // pred_check
          %p266 = pneg %p108
        $region34: #{tpu_custom_call.1} parent=23 // pred_check_branch
          %268 = sbr.rel (%p266) target = $region36
        $region35: #{tpu_custom_call.1} parent=23 // pred_region
          %p269 = scmp.lt.s32.totalorder %s25, 3
          %s270 = scalar_select %p269, %s25, 3
          %p271 = scmp.lt.s32.totalorder %s26, 1
          %s272 = scalar_select %p271, %s26, 1
          %s273 = smul.addr %s270, 2
          %s274 = sadd.s32 %s272, %s273
          %s275 = smul.addr %s274, 8
          %s276 = scalar_lea.vmem %s2, %s275
        $region36: #{tpu_custom_call.1} parent=23 // pred_fallthru
          _
        // Predicated region
        $region37: #{tpu_custom_call.1} parent=23 // pred_check
          %p277 = pneg %p134
        $region38: #{tpu_custom_call.1} parent=23 // pred_check_branch
          %279 = sbr.rel (%p277) target = $region40
        $region39: #{tpu_custom_call.1} parent=23 // pred_region
          %p280 = scmp.lt.s32.totalorder %s26, 1
          %s281 = scalar_select %p280, %s26, 1
          %s282 = smul.addr %s281, 8
          %s283 = scalar_lea.vmem %s3, %s282
        $region40: #{tpu_custom_call.1} parent=23 // pred_fallthru
          _
      $region24: #{tpu_custom_call.1} parent=5 // pred_fallthru
        _
      %p284 = scmp.le.s32.totalorder 1, %s18
      %p285 = scmp.lt.s32.totalorder %s18, 9
      %p286 = pnand %p284, %p285
      %p287 = pneg %p286
      // Predicated region
      $region41: #{tpu_custom_call.1} parent=5 // pred_check
        _
      $region42: #{tpu_custom_call.1} parent=5 // pred_check_branch
        %289 = sbr.rel (%p286) target = $region44
      $region43: #{tpu_custom_call.1} parent=5 // pred_region
        %s290 = ssub.s32 %s18, 1
        %s291 = sand.u32 %s45, 1
        %s292 = scalar_lea.sflag [#allocation3], %s291
        %s293 = sand.u32 %s45, 1
        %s294 = smul.addr %s293, 8
        %s295 = scalar_lea.vmem [#allocation2], %s294
        // Predicated region
        $region45: #{tpu_custom_call.1} parent=43 // pred_check
          %p296 = pneg %p58
        $region46: #{tpu_custom_call.1} parent=43 // pred_check_branch
          %298 = sbr.rel (%p296) target = $region48
        $region47: #{tpu_custom_call.1} parent=43 // pred_region
          %299 = dma.done %s292, 128
        $region48: #{tpu_custom_call.1} parent=43 // pred_fallthru
          _
        %s300 = sand.u32 %s45, 1
        %s301 = scalar_lea.sflag [#allocation3], %s300
        %s302 = sand.u32 %s45, 1
        %s303 = smul.addr %s302, 8
        %s304 = scalar_lea.vmem [#allocation2], %s303
        %p305 = pneg %p58
        %p306 = pneg %p55
        %p307 = scmp.lt.s32.totalorder %s27, 3
        %s308 = scalar_select %p307, %s27, 3
        %p309 = scmp.lt.s32.totalorder %s28, 1
        %s310 = scalar_select %p309, %s28, 1
        %s311 = smul.addr %s308, 2
        %s312 = sadd.s32 %s310, %s311
        %s313 = smul.addr %s312, 8
        %s314 = scalar_lea.vmem %s1, %s313
        %p315 = pneg %p86
        %p316 = pneg %p83
        %p317 = scmp.lt.s32.totalorder %s27, 3
        %s318 = scalar_select %p317, %s27, 3
        %p319 = scmp.lt.s32.totalorder %s28, 1
        %s320 = scalar_select %p319, %s28, 1
        %s321 = smul.addr %s318, 2
        %s322 = sadd.s32 %s320, %s321
        %s323 = smul.addr %s322, 8
        %s324 = scalar_lea.vmem %s2, %s323
        %p325 = pneg %p114
        %p326 = pneg %p111
        %p327 = scmp.lt.s32.totalorder %s28, 1
        %s328 = scalar_select %p327, %s28, 1
        %s329 = smul.addr %s328, 8
        %s330 = scalar_lea.vmem %s3, %s329
        %p331 = pneg %p140
        %p332 = pneg %p137
        %p333 = pneg %p161
        %p334 = pneg %p158
        %p335 = pneg %p182
        %p336 = pneg %p179
        %p337 = pneg %p210
        %p338 = pneg %p207
        %s339 = sand.u32 %s197, 1
        %s340 = scalar_lea.sflag [#allocation4], %s339
        %s341 = sand.u32 %s197, 1
        %s342 = smul.addr %s341, 8
        %s343 = scalar_lea.vmem [#allocation5], %s342
        %p344 = scmp.lt.s32.totalorder %s27, 3
        %s345 = scalar_select %p344, %s27, 3
        %p346 = scmp.lt.s32.totalorder %s28, 1
        %s347 = scalar_select %p346, %s28, 1
        %s348 = smul.addr %s345, 2
        %s349 = sadd.s32 %s347, %s348
        %s350 = smul.addr %s349, 8
        %s351 = scalar_lea.vmem %s1, %s350
        %p352 = scmp.lt.s32.totalorder %s27, 3
        %s353 = scalar_select %p352, %s27, 3
        %p354 = scmp.lt.s32.totalorder %s28, 1
        %s355 = scalar_select %p354, %s28, 1
        %s356 = smul.addr %s353, 2
        %s357 = sadd.s32 %s355, %s356
        %s358 = smul.addr %s357, 8
        %s359 = scalar_lea.vmem %s2, %s358
        %p360 = scmp.lt.s32.totalorder %s28, 1
        %s361 = scalar_select %p360, %s28, 1
        %s362 = smul.addr %s361, 8
        %s363 = scalar_lea.vmem %s3, %s362
        %v364 = vld [vmem:[%s295] sm:$0xff]
        %v365 = vld [vmem:[%s351] sm:$0xff]
        %v366 = vld [vmem:[%s4] sm:$0x1]
        %368 = vset.pattern.permute.xlu0 0
        %369 = vperm.xlu0 %368, %v365
        %v370 = vpop.permute.xlu0 %369
        %v373 = vlaneseq
        %v374 = vshrl.u32 %v373, 7
        %v375 = vsub.s32 0, %v374
        %v376 = vrot.slane %v366, %v375
        %v378 = vmul.f32 %v370, %v376
        %v379 = vld [vmem:[%s359] sm:$0xff]
        %v380 = vld [vmem:[%s5] sm:$0x1]
        %382 = vset.pattern.permute.xlu0 0
        %383 = vperm.xlu0 %382, %v379
        %v384 = vpop.permute.xlu0 %383
        %v387 = vlaneseq
        %v388 = vshrl.u32 %v387, 7
        %v389 = vsub.s32 0, %v388
        %v390 = vrot.slane %v380, %v389
        %v392 = vmul.f32 %v384, %v390
        %v393 = vadd.f32 %v378, %v392
        %v394 = vld [vmem:[%s363] sm:$0xff]
        %v395 = vadd.f32 %v364, %v394
        %v396 = vand.u32 2147483647, %v393
        %vm397 = vcmp.le.f32.partialorder %v396, 0.7853982
        %vm398 = vcmp.lt.s32.totalorder %v393, 0
        %v399 = vand.u32 %v393, 2139095040
        %v400 = vshrl.u32 %v399, 23
        %v401 = vsub.s32 %v400, 127
        %v402 = vand.u32 2147483647, %v393
        %v403 = vand.u32 %v402, 8388607
        %v404 = vor.u32 %v403, 8388608
        %v405 = vsub.s32 0, %v404
        %v406 = vadd.s32 %v401, 1
        %vm407 = vcmp.gt.s32.totalorder %v406, 0
        %v408 = vsel %vm407, %v406, 0
        %v409 = vshrl.u32 %v408, 5
        %v410 = vand.u32 %v408, 31
        %v411 = vsub.s32 32, %v410
        %v412 = vshrl.u32 683565275, %v411
        %v413 = vshll.u32 683565275, %v410
        %v414 = vshrl.u32 2475754826, %v411
        %v415 = vor.u32 %v413, %v414
        %v416 = vshll.u32 2475754826, %v410
        %v417 = vshrl.u32 2131351028, %v411
        %v418 = vor.u32 %v416, %v417
        %v419 = vshll.u32 2131351028, %v410
        %v420 = vshrl.u32 2102212464, %v411
        %v421 = vor.u32 %v419, %v420
        %v422 = vshll.u32 2102212464, %v410
        %v423 = vshrl.u32 920167782, %v411
        %v424 = vor.u32 %v422, %v423
        %v425 = vshll.u32 920167782, %v410
        %v426 = vshrl.u32 1326507024, %v411
        %v427 = vor.u32 %v425, %v426
        %vm428 = vcmp.lt.s32.totalorder %v409, 1
        %vm429 = vcmp.lt.s32.totalorder %v409, 2
        %vm430 = vcmp.lt.s32.totalorder %v409, 3
        %vm431 = vcmp.lt.s32.totalorder %v409, 4
        %v432 = vsel %vm428, %v412, %v415
        %v433 = vsel %vm431, %v421, 2102212464
        %v434 = vsel %vm430, %v418, %v433
        %v435 = vsel %vm429, %v432, %v434
        %v436 = vsel %vm428, %v415, %v418
        %v437 = vsel %vm431, %v424, 920167782
        %v438 = vsel %vm430, %v421, %v437
        %v439 = vsel %vm429, %v436, %v438
        %v440 = vsel %vm428, %v418, %v421
        %v441 = vsel %vm431, %v427, 1326507024
        %v442 = vsel %vm430, %v424, %v441
        %v443 = vsel %vm429, %v440, %v442
        %v444 = vshll.u32 %v404, 8
        %v445 = vmul.u32.u64.compose %v444, %v443
        %v446 = vextract.low.u32 %v445
        %v447 = vextract.high.u32 %v445
        %v448 = vmul.u32.u64.compose %v444, %v439
        %v449 = vextract.low.u32 %v448
        %v450 = vextract.high.u32 %v448
        %v451 = vmul.u32 %v444, %v435
        %v452 = vadd.s32 %v447, %v449
        %vm453 = vc.u32 %v447, %v449
        %v454 = vadd.s32 %v450, 1
        %v455 = vsel %vm453, %v454, %v450
        %v456 = vadd.s32 %v451, %v455
        %v457 = vadd.s32 %v456, 536870912
        %v458 = vshrl.u32 %v457, 30
        %v459 = vshll.u32 %v458, 30
        %v460 = vsub.s32 %v456, %v459
        %vm461 = vcmp.lt.s32.totalorder %v460, 0
        %v462 = vsub.s32 0, %v460
        %v463 = vsel %vm461, %v462, %v460
        %v464 = vclz %v463
        %v465 = vsub.s32 %v464, 2
        %vm466 = vcmp.gt.s32.totalorder 0, %v465
        %v467 = vsel %vm466, 0, %v465
        %v468 = vsub.s32 32, %v467
        %v469 = vshll.u32 %v460, %v467
        %v470 = vshrl.u32 %v452, %v468
        %v471 = vor.u32 %v469, %v470
        %v472 = vsub.s32 4294967266, %v467
        %v473 = vadd.s32 %v472, 127
        %v474 = vshll.u32 %v473, 23
        %v475 = vor.u32 4788187, %v474
        %v476 = vand.u32 2147483647, %v475
        %v478 = vcvt.s32.f32 %v471
        %v479 = vmul.f32 %v478, %v476
        %v480 = vxor.u32 %v479, 2147483648
        %v481 = vsel %vm398, %v480, %v479
        %v482 = vsub.s32 4, %v458
        %v483 = vsel %vm398, %v482, %v458
        %v484 = vsel %vm397, %v393, %v481
        %v485 = vsel %vm397, 0, %v483
        %v486 = vcosq.f32.pop %v484
        %v487 = vsinq.f32.pop %v484
        %vm488 = vweird.f32 %v393
        %v489 = vand.u32 %v485, 3
        %vm490 = vcmp.lt.s32.totalorder %v489, 2
        %vm491 = vcmp.eq.s32.totalorder %v489, 0
        %v492 = vxor.u32 %v487, 2147483648
        %v493 = vsel %vm491, %v486, %v492
        %vm494 = vcmp.eq.s32.totalorder %v489, 2
        %v495 = vxor.u32 %v486, 2147483648
        %v496 = vsel %vm494, %v495, %v487
        %v497 = vsel %vm490, %v493, %v496
        %v498 = vsel %vm488, nan, %v497
        %v499 = vadd.f32 %v395, %v498
        %500 = vst [vmem:[%s343] sm:$0xff] %v499
        %s501 = sand.u32 %s197, 1
        %s502 = scalar_lea.sflag [#allocation4], %s501
        %s503 = sand.u32 %s197, 1
        %s504 = smul.addr %s503, 8
        %s505 = scalar_lea.vmem [#allocation5], %s504
        // Predicated region
        $region49: #{tpu_custom_call.1} parent=43 // pred_check
          %p506 = pneg %p207
        $region50: #{tpu_custom_call.1} parent=43 // pred_check_branch
          %508 = sbr.rel (%p506) target = $region52
        $region51: #{tpu_custom_call.1} parent=43 // pred_region
          %s510 = ssub.s32 128, 128
          %511 = vsyncadd %s502, %s510
          %s512 = smul.addr %s27, 2
          %s513 = sadd.s32 %s28, %s512
          %s514 = smul.addr %s513, 128
          %s515 = scalar_lea.hbm %s6, %s514
          %s517 = sshll.u32 %s505, 4
          %s518 = int_to_ptr.vmem [resolvable:$true] %s517
          %520 = dma.vmem_to_hbm [thread:$0]  %s518, 128, %s515, %s502
        $region52: #{tpu_custom_call.1} parent=43 // pred_fallthru
          _
      $region44: #{tpu_custom_call.1} parent=5 // pred_fallthru
        _
      %p521 = scmp.le.s32.totalorder 2, %s18
      // Predicated region
      $region53: #{tpu_custom_call.1} parent=5 // pred_check
        %p522 = pneg %p521
      $region54: #{tpu_custom_call.1} parent=5 // pred_check_branch
        %524 = sbr.rel (%p522) target = $region56
      $region55: #{tpu_custom_call.1} parent=5 // pred_region
        %s525 = ssub.s32 %s18, 2
        // Predicated region
        $region57: #{tpu_custom_call.1} parent=55 // pred_check
          %p526 = pneg %p213
        $region58: #{tpu_custom_call.1} parent=55 // pred_check_branch
          %528 = sbr.rel (%p526) target = $region60
        $region59: #{tpu_custom_call.1} parent=55 // pred_region
          %s529 = sand.u32 %s198, 1
          %s530 = scalar_lea.sflag [#allocation4], %s529
          %s531 = sand.u32 %s198, 1
          %s532 = smul.addr %s531, 8
          %s533 = scalar_lea.vmem [#allocation5], %s532
          %534 = dma.done %s530, 128
        $region60: #{tpu_custom_call.1} parent=55 // pred_fallthru
          _
      $region56: #{tpu_custom_call.1} parent=5 // pred_fallthru
        _
    $region6: #{tpu_custom_call.1} parent=1 // loop_footer
      %s22 = sadd.s32 1, %s18
    $region7: #{tpu_custom_call.1} parent=1 // loop_footer_branch
      %17 = sbr.rel target = $region3
    $region8: #{tpu_custom_call.1} parent=1 // loop_exit
      _
    %535 = vsyncpa [#allocation3], 1
    %s536 = scalar_lea.sflag [#allocation3], 1
    %537 = vsyncpa %s536, 1
    %538 = vsyncpa [#allocation4], 1
    %s539 = scalar_lea.sflag [#allocation4], 1
    %540 = vsyncpa %s539, 1

</llo_original>
